<compile_context>
chip_gen: v7x
topology: tpu7x:2x2x1
jax: 0.10.0
libtpu: 0.0.40
codegen_flags: <defaults>
</compile_context>

<pallas_src>
import jax
import jax.numpy as jnp
from jax.experimental import pallas as pl
from jax.experimental.pallas import tpu as pltpu


# --------------------------------------------------------------------------- #
# Kernel: weight-stationary (P, L) @ (L, tile_n) matmul + bias per lane tile.
# --------------------------------------------------------------------------- #
def dlinear_kernel(x_ref, w_ref, b_ref, o_ref):
    """x_ref: (L, tile_n)  w_ref: (P, L)  b_ref: (P, 1)  o_ref: (P, tile_n)."""
    acc = jnp.dot(w_ref[...], x_ref[...], preferred_element_type=jnp.float32)
    o_ref[...] = (acc + b_ref[...]).astype(o_ref.dtype)


# --------------------------------------------------------------------------- #
# Parameter fusion (hoisted: run once per parameter update, not per forward).
# --------------------------------------------------------------------------- #
def _moving_avg_matrix(L, kernel_size):
    """A[t, s]: weight of x[s] in trend[t] for AvgPool1d(stride=1) with
    replicate padding of (k-1)//2 on both ends (odd k)."""
    k = kernel_size
    p = (k - 1) // 2
    dst = jnp.arange(L, dtype=jnp.int32)[:, None]   # output time index t
    src = jnp.arange(L, dtype=jnp.int32)[None, :]   # source time index s
    count = jnp.zeros((L, L), jnp.float32)
    for j in range(k):  # static unroll, k is small
        idx = jnp.clip(dst - p + j, 0, L - 1)
        count = count + (idx == src).astype(jnp.float32)
    return count * (1.0 / k)


def fuse_dlinear_params(w_seasonal, b_seasonal, w_trend, b_trend,
                        *, kernel_size, seq_len):
    """Fused weight/bias: out = w_fused @ x_time + b_fused."""
    assert kernel_size % 2 == 1, "moving_avg replicate padding requires odd kernel_size"
    A = _moving_avg_matrix(seq_len, kernel_size)                  # (L, L)
    ws = w_seasonal.astype(jnp.float32)
    wt = w_trend.astype(jnp.float32)
    w_fused = ws + jnp.dot(wt - ws, A)                            # (P, L)
    b_fused = (b_seasonal + b_trend).astype(jnp.float32)          # (P,)
    return w_fused, b_fused


# --------------------------------------------------------------------------- #
# Forward pass on pre-fused parameters.
# --------------------------------------------------------------------------- #
def dlinear_forward_fused(x, w_fused, b_fused, *, pred_len, c_out, io_dtype=None):
    """x: [B, L, C] -> [B, pred_len, c_out]."""
    B, L, C = x.shape
    P = pred_len
    assert w_fused.shape == (P, L), w_fused.shape
    assert c_out <= C, "c_out must not exceed enc_in"

    if io_dtype is not None:              # e.g. jnp.bfloat16 for HBM/DMA savings
        x = x.astype(io_dtype)
    w = w_fused.astype(x.dtype)
    b = b_fused.astype(jnp.float32).reshape(P, 1)

    # Flatten batch*channels onto the lane axis -> lane-dense GEMM.
    N = B * C
    x2 = jnp.transpose(x, (1, 0, 2)).reshape(L, N)                # (L, B*C)

    # Lane tiling: full width if tiny, otherwise 512-wide 128-aligned tiles.
    if N <= 256:
        tile_n = N                          # single full-extent tile
    else:
        tile_n = 512
        if pl.cdiv(N, tile_n) < 2:
            # Keep >= 2 grid steps so v7x megacore can shard across TensorCores.
            tile_n = pl.cdiv(pl.cdiv(N, 2), 128) * 128
    n_tiles = pl.cdiv(N, tile_n)

    # VMEM budget: 2x in tile + 2x out tile (double-buffered) + resident weight.
    xbytes = x2.dtype.itemsize
    wbytes = w.dtype.itemsize
    resident = (2 * L * tile_n * xbytes + 2 * P * tile_n * xbytes
                + 2 * P * L * wbytes + 2 * P * 4)
    vmem_limit = int(min(max(resident + (8 << 20), 32 << 20), 60 << 20))

    out2 = pl.pallas_call(
        dlinear_kernel,
        out_shape=jax.ShapeDtypeStruct((P, N), x.dtype),
        grid=(n_tiles,),
        in_specs=[
            # Activation lane tile (partial edge block handled by Pallas; safe
            # because each output lane depends only on its own input lane).
            pl.BlockSpec((L, tile_n), lambda i: (0, i)),
            # Fused weight / bias: constant index_map -> resident across grid.
            pl.BlockSpec((P, L), lambda i: (0, 0)),
            pl.BlockSpec((P, 1), lambda i: (0, 0)),
        ],
        out_specs=pl.BlockSpec((P, tile_n), lambda i: (0, i)),
        compiler_params=pltpu.CompilerParams(
            dimension_semantics=("parallel",),
            vmem_limit_bytes=vmem_limit),
        cost_estimate=pl.CostEstimate(
            flops=2 * P * L * N,
            transcendentals=0,
            bytes_accessed=xbytes * L * N + wbytes * P * L + xbytes * P * N),
    )(x2, w, b)

    # (P, B*C) -> (B, P, C), then slice channels.
    out = jnp.transpose(out2.reshape(P, B, C), (1, 0, 2))
    return out[:, :P, :c_out]


def dlinear_forward(x, w_seasonal, b_seasonal, w_trend, b_trend,
                    *, kernel_size, pred_len, c_out, io_dtype=None):
    """Convenience wrapper: fuse params then run the kernel (fusion should be
    hoisted out of hot loops via fuse_dlinear_params)."""
    B, L, C = x.shape
    w_fused, b_fused = fuse_dlinear_params(
        w_seasonal, b_seasonal, w_trend, b_trend,
        kernel_size=kernel_size, seq_len=L)
    return dlinear_forward_fused(x, w_fused, b_fused,
                                 pred_len=pred_len, c_out=c_out, io_dtype=io_dtype)


# --------------------------------------------------------------------------- #
# Pure-JAX reference mirroring the PyTorch forward exactly (no fusion).
# --------------------------------------------------------------------------- #
def dlinear_reference(x, w_seasonal, b_seasonal, w_trend, b_trend,
                      *, kernel_size, pred_len, c_out):
    B, L, C = x.shape
    p = (kernel_size - 1) // 2
    front = jnp.repeat(x[:, 0:1, :], p, axis=1)
    end = jnp.repeat(x[:, -1:, :], p, axis=1)
    xp = jnp.concatenate([front, x, end], axis=1)  # [B, L+2p, C]
    trend = jnp.stack(
        [xp[:, t:t + kernel_size, :].mean(axis=1) for t in range(L)], axis=1)
    seasonal = x - trend
    s = jnp.transpose(seasonal, (0, 2, 1))  # [B, C, L]
    t = jnp.transpose(trend, (0, 2, 1))
    so = jnp.einsum("bcl,pl->bcp", s, w_seasonal) + b_seasonal
    to = jnp.einsum("bcl,pl->bcp", t, w_trend) + b_trend
    out = (so + to).transpose(0, 2, 1)  # [B, P, C]
    return out[:, :pred_len, :c_out]


# --------------------------------------------------------------------------- #
# Self-test.
# --------------------------------------------------------------------------- #
def _run_case(key, *, B, L, P, C, c_out, k):
    kx, kws, kbs, kwt, kbt = jax.random.split(key, 5)
    x = jax.random.normal(kx, (B, L, C), dtype=jnp.float32)
    bound = 1.0 / (L ** 0.5)
    w_seasonal = jax.random.uniform(kws, (P, L), jnp.float32, -bound, bound)
    b_seasonal = jax.random.uniform(kbs, (P,), jnp.float32, -bound, bound)
    w_trend = jax.random.uniform(kwt, (P, L), jnp.float32, -bound, bound)
    b_trend = jax.random.uniform(kbt, (P,), jnp.float32, -bound, bound)

    # Fusion hoisted out of the forward path.
    w_fused, b_fused = fuse_dlinear_params(
        w_seasonal, b_seasonal, w_trend, b_trend, kernel_size=k, seq_len=L)

    out = dlinear_forward_fused(x, w_fused, b_fused, pred_len=P, c_out=c_out)
    out = jax.block_until_ready(out)

    ref = dlinear_reference(x, w_seasonal, b_seasonal, w_trend, b_trend,
                            kernel_size=k, pred_len=P, c_out=c_out)

    assert out.shape == (B, P, c_out), out.shape
    err = float(jnp.max(jnp.abs(out - ref)))
    assert jnp.allclose(out, ref, atol=1e-3, rtol=1e-3), err
    return err


if __name__ == "__main__":
    root = jax.random.PRNGKey(0)
    k1, k2 = jax.random.split(root, 2)

    # Case 1: small configuration implied by the module (tiny B*C -> single tile).
    _run_case(k1, B=2, L=16, P=8, C=4, c_out=3, k=5)

    # Case 2: larger channel count -> lane-tiled path with a partial edge block
    # (B*C = 640 -> tile_n = 512, grid = 2).
    _run_case(k2, B=4, L=32, P=16, C=160, c_out=150, k=7)

    print("KERNEL_OK")
</pallas_src>

<mosaic_0001>
module attributes {stable_mosaic.version = 11 : i64} {
  func.func @dlinear_kernel(%arg0: i32, %arg1: memref<16x8xf32, #tpu.memory_space<vmem>>, %arg2: memref<8x16xf32, #tpu.memory_space<vmem>>, %arg3: memref<8x1xf32, #tpu.memory_space<vmem>>, %arg4: memref<8x8xf32, #tpu.memory_space<vmem>>) attributes {dimension_semantics = [#tpu.dimension_semantics<parallel>], iteration_bounds = array<i64: 1>, scalar_prefetch = 0 : i64, scratch_operands = 0 : i64, tpu.core_type = #tpu.core_type<tc>, window_params = [{transform_indices = @transform_0, window_bounds = array<i64: 16, 8>}, {pipeline_mode = #tpu.pipeline_mode<synchronous>, transform_indices = @transform_1, window_bounds = array<i64: 8, 16>}, {pipeline_mode = #tpu.pipeline_mode<synchronous>, transform_indices = @transform_2, window_bounds = array<i64: 8, 1>}, {transform_indices = @transform_3, window_bounds = array<i64: 8, 8>}]} {
    %c0 = arith.constant 0 : index
    %c0_0 = arith.constant 0 : index
    %0 = vector.load %arg2[%c0, %c0_0] : memref<8x16xf32, #tpu.memory_space<vmem>>, vector<8x16xf32>
    %c0_1 = arith.constant 0 : index
    %c0_2 = arith.constant 0 : index
    %1 = vector.load %arg1[%c0_1, %c0_2] : memref<16x8xf32, #tpu.memory_space<vmem>>, vector<16x8xf32>
    %cst = arith.constant dense<0.000000e+00> : vector<8x8xf32>
    %2 = tpu.matmul %0, %1, %cst {dimension_numbers = #tpu.dot_dimension_numbers<[1], [0], [0], [1], [0, 0, 1, 1], [], []>} : vector<8x16xf32>, vector<16x8xf32>, vector<8x8xf32> -> vector<8x8xf32>
    %c0_3 = arith.constant 0 : index
    %c0_4 = arith.constant 0 : index
    %3 = vector.load %arg3[%c0_3, %c0_4] : memref<8x1xf32, #tpu.memory_space<vmem>>, vector<8x1xf32>
    %4 = vector.broadcast %3 : vector<8x1xf32> to vector<8x8xf32>
    %5 = arith.addf %2, %4 : vector<8x8xf32>
    %c0_5 = arith.constant 0 : index
    %c0_6 = arith.constant 0 : index
    %6 = vector.load %arg4[%c0_5, %c0_6] : memref<8x8xf32, #tpu.memory_space<vmem>>, vector<8x8xf32>
    tpu.vector_store %arg4[%c0_5, %c0_6], %5 {strides = array<i32>} : memref<8x8xf32, #tpu.memory_space<vmem>>, vector<8x8xf32>,
    return
  }
  func.func @transform_0(%arg0: i32) -> (i32, i32) {
    %c0_i32 = arith.constant 0 : i32
    %c0_i32_0 = arith.constant 0 : i32
    return %c0_i32, %arg0 : i32, i32
  }
  func.func @transform_1(%arg0: i32) -> (i32, i32) {
    %c0_i32 = arith.constant 0 : i32
    %c0_i32_0 = arith.constant 0 : i32
    %c0_i32_1 = arith.constant 0 : i32
    return %c0_i32, %c0_i32_0 : i32, i32
  }
  func.func @transform_2(%arg0: i32) -> (i32, i32) {
    %c0_i32 = arith.constant 0 : i32
    %c0_i32_0 = arith.constant 0 : i32
    %c0_i32_1 = arith.constant 0 : i32
    return %c0_i32, %c0_i32_0 : i32, i32
  }
  func.func @transform_3(%arg0: i32) -> (i32, i32) {
    %c0_i32 = arith.constant 0 : i32
    %c0_i32_0 = arith.constant 0 : i32
    return %c0_i32, %arg0 : i32, i32
  }
}

</mosaic_0001>

<llo_original>
// kernel: tpu_custom_call.1
$region0: #{tpu_custom_call.1}
  #allocation0 [shape = 'u32[]', space=smem, size = 0x4, offset = 0x4, fixed_abs, tag = 'smem constant byte address 0x4 - core index']
  #allocation1 [shape = 'u32[144,128]{1,0:T(1,128)}', space=vmem, size = 0x12000, scoped, tag = 'internal scratch']
  %s0 = inlined_call_operand.vmem [shape: f32[16,8], index: 0, kind: input, shape index: {}]
  %s1 = inlined_call_operand.vmem [shape: f32[8,16], index: 1, kind: input, shape index: {}]
  %s2 = inlined_call_operand.vmem [shape: f32[8,1], index: 2, kind: input, shape index: {}]
  %s3 = inlined_call_operand.hbm [shape: f32[8,8], index: 3, kind: output, shape index: {}]
  %s4 = sld [smem:[#allocation0]]
  $region22: #{tpu_custom_call.1} parent=0
    _
  %s6 = ssub.s32 1, %s4
  %s7 = scalar_select 0, %s6, %s4
  $region1: #{tpu_custom_call.1} parent=0
    #allocation2 [shape = 'u8[4096]{0}', space=vmem, size = 0x1000, scoped, tag = 'output window, operand 0, single buffered']
    #allocation3 [shape = 's32[1]{0}', space=sflag, size = 0x4, scoped, tag = 'scoped memory for tpu_custom_call.1']
    %8 = vsyncpa [#allocation3], 0
    // Predicated region
    $region2: #{tpu_custom_call.1} parent=1 // pred_check
      _
    $region3: #{tpu_custom_call.1} parent=1 // pred_check_branch
      %10 = sbr.rel (0) target = $region5
    $region4: #{tpu_custom_call.1} parent=1 // pred_region
      _
    $region5: #{tpu_custom_call.1} parent=1 // pred_fallthru
      _
    // Predicated region
    $region6: #{tpu_custom_call.1} parent=1 // pred_check
      _
    $region7: #{tpu_custom_call.1} parent=1 // pred_check_branch
      %12 = sbr.rel (0) target = $region9
    $region8: #{tpu_custom_call.1} parent=1 // pred_region
      _
    $region9: #{tpu_custom_call.1} parent=1 // pred_fallthru
      _
    // Predicated region
    $region10: #{tpu_custom_call.1} parent=1 // pred_check
      _
    $region11: #{tpu_custom_call.1} parent=1 // pred_check_branch
      %14 = sbr.rel (0) target = $region13
    $region12: #{tpu_custom_call.1} parent=1 // pred_region
      _
    $region13: #{tpu_custom_call.1} parent=1 // pred_fallthru
      _
    %v15 = vld [vmem:[%s1] sm:$0xff]
    %v16 = vld [vmem:[%s0] sm:$0xff]
    %v17 = vld [vmem:[%s0 + $0x8] sm:$0xff]
    %v18 = vld [vmem:[%s2] sm:$0xff]
    %20 = vset.pattern.permute.xlu0 0
    %21 = vperm.xlu0 %20, %v18
    %v22 = vpop.permute.xlu0 %21
    %vm24 = vcmask 130048
    %v26 = vsel %vm24, %v15, 0
    %28 = vmatprep.subr.mxu0 0.0
    %29 = vmatpush1.msra.mxu0 %v16
    %30 = vmatprep.subr.mxu0 0.0
    %31 = vmatpush1.msra.mxu0 %v17
    %32 = vmatprep.subr.mxu0 0.0
    %33 = vmatpush1.msra.mxu0 0.0
    %34 = vmatprep.subr.mxu0 0.0
    %35 = vmatpush1.msra.mxu0 0.0
    %36 = vmatprep.subr.mxu0 0.0
    %37 = vmatpush1.msra.mxu0 0.0
    %38 = vmatprep.subr.mxu0 0.0
    %39 = vmatpush1.msra.mxu0 0.0
    %40 = vmatprep.subr.mxu0 0.0
    %41 = vmatpush1.msra.mxu0 0.0
    %42 = vmatprep.subr.mxu0 0.0
    %43 = vmatpush1.msra.mxu0 0.0
    %44 = vmatprep.subr.mxu0 0.0
    %45 = vmatpush1.msra.mxu0 0.0
    %46 = vmatprep.subr.mxu0 0.0
    %47 = vmatpush1.msra.mxu0 0.0
    %48 = vmatprep.subr.mxu0 0.0
    %49 = vmatpush1.msra.mxu0 0.0
    %50 = vmatprep.subr.mxu0 0.0
    %51 = vmatpush1.msra.mxu0 0.0
    %52 = vmatprep.subr.mxu0 0.0
    %53 = vmatpush1.msra.mxu0 0.0
    %54 = vmatprep.subr.mxu0 0.0
    %55 = vmatpush1.msra.mxu0 0.0
    %56 = vmatprep.subr.mxu0 0.0
    %57 = vmatpush1.msra.mxu0 0.0
    %58 = vmatprep.subr.mxu0 0.0
    %59 = vmatpush1.msra.mxu0 0.0
    %60 = vmatprep.subr.mxu0 0.0
    %61 = vmatpush1.msra.mxu0 0.0
    %62 = vmatprep.subr.mxu0 0.0
    %63 = vmatpush1.msra.mxu0 0.0
    %64 = vmatprep.subr.mxu0 0.0
    %65 = vmatpush1.msra.mxu0 0.0
    %66 = vmatprep.subr.mxu0 0.0
    %67 = vmatpush1.msra.mxu0 0.0
    %68 = vmatprep.subr.mxu0 0.0
    %69 = vmatpush1.msra.mxu0 0.0
    %70 = vmatprep.subr.mxu0 0.0
    %71 = vmatpush1.msra.mxu0 0.0
    %72 = vmatprep.subr.mxu0 0.0
    %73 = vmatpush1.msra.mxu0 0.0
    %74 = vmatprep.subr.mxu0 0.0
    %75 = vmatpush1.msra.mxu0 0.0
    %76 = vmatprep.subr.mxu0 0.0
    %77 = vmatpush1.msra.mxu0 0.0
    %78 = vmatprep.subr.mxu0 0.0
    %79 = vmatpush1.msra.mxu0 0.0
    %80 = vmatprep.subr.mxu0 0.0
    %81 = vmatpush1.msra.mxu0 0.0
    %82 = vmatprep.subr.mxu0 0.0
    %83 = vmatpush1.msra.mxu0 0.0
    %84 = vmatprep.subr.mxu0 0.0
    %85 = vmatpush1.msra.mxu0 0.0
    %86 = vmatprep.subr.mxu0 0.0
    %87 = vmatpush1.msra.mxu0 0.0
    %88 = vmatprep.subr.mxu0 0.0
    %89 = vmatpush1.msra.mxu0 0.0
    %90 = vmatprep.subr.mxu0 0.0
    %91 = vmatpush1.msra.mxu0 0.0
    %92 = vmatprep.mubr.f32.mxu0 0.0
    %93 = vmatmul.mubr.f32.gmra.mrb[0].mxu0 %v26
    %v94 = vpop.f32.mrb[0].mxu0
    %v95 = vadd.f32 %v22, %v94
    %v96 = vpop.f32.mrb[0].mxu0
    %97 = vdwg.mxu0
    %vm98 = vcmask 64512
    %99 = vst.msk [vmem:[#allocation2] sm:$0xff] %vm98, %v95
    // Predicated region
    $region14: #{tpu_custom_call.1} parent=1 // pred_check
      _
    $region15: #{tpu_custom_call.1} parent=1 // pred_check_branch
      %101 = sbr.rel (0) target = $region17
    $region16: #{tpu_custom_call.1} parent=1 // pred_region
      %s103 = ssub.s32 128, 128
      %104 = vsyncadd [#allocation3], %s103
      %s106 = sshll.u32 [#allocation2], 4
      %s107 = int_to_ptr.vmem [resolvable:$true] %s106
      %109 = dma.vmem_to_hbm [thread:$0]  %s107, 128, %s3, [#allocation3]
    $region17: #{tpu_custom_call.1} parent=1 // pred_fallthru
      _
    // Predicated region
    $region18: #{tpu_custom_call.1} parent=1 // pred_check
      _
    $region19: #{tpu_custom_call.1} parent=1 // pred_check_branch
      %111 = sbr.rel (0) target = $region21
    $region20: #{tpu_custom_call.1} parent=1 // pred_region
      %112 = dma.done [#allocation3], 128
    $region21: #{tpu_custom_call.1} parent=1 // pred_fallthru
      _
    %113 = vsyncpa [#allocation3], 1

</llo_original>
